<compile_context>
chip_gen: v7x
topology: tpu7x:2x2x1
jax: 0.10.0
libtpu: 0.0.40
codegen_flags: <defaults>
</compile_context>

<pallas_src>
import numpy as np
import jax
import jax.numpy as jnp
from jax import lax
from jax.experimental import pallas as pl
from jax.experimental.pallas import tpu as pltpu

_MIB = 1024 * 1024

# Padded VMEM bytes per row of the lane-thin blocks: the (TB, 3) f32 side block
# and the (TB, 1) f32 output block each pad their last dim to 128 lanes.
_THIN_ROW_BYTES = 2 * 128 * 4


def _tpu_vmem_capacity_bytes():
    try:
        info = pltpu.get_tpu_info()
        cap = int(getattr(info, "vmem_capacity_bytes", 0))
        if cap > 0:
            return cap
    except Exception:
        pass
    return 64 * _MIB  # v7x per-TensorCore physical VMEM: the smallest current gen.


def _native_bf16_compute_ok():
    # bf16 VALU/EUP exist on v6e / v7x; older generations (v4/v5e) compute in f32.
    try:
        kind = jax.devices()[0].device_kind.lower()
    except Exception:
        return False
    return ("v6" in kind) or ("v7" in kind)


def _plan_tiles(batch, n_classes, itemsize, tile_rows=None):
    """Pick batch-tile rows + a scoped-VMEM limit from the device's VMEM capacity."""
    cap = _tpu_vmem_capacity_bytes()
    # Total resident (double-buffered) budget: generous on v5e/v6e (128 MiB
    # physical), capped at ~32 MiB on v7x (64 MiB per TensorCore).
    budget_total = min(cap // 2, 48 * _MIB)
    row_bytes = n_classes * itemsize + _THIN_ROW_BYTES

    if tile_rows is None:
        rows = max(8, (budget_total // 2) // row_bytes)   # per-buffer budget
        rows = max(8, (rows // 8) * 8)
        if rows >= 256:
            rows = (rows // 256) * 256                    # lane/sublane friendly
        b_aligned = max(8, (batch // 8) * 8)              # never taller than B (B >= 8)
        tb = min(rows, b_aligned)
    else:
        tb = int(tile_rows)
        assert tb > 0 and tb % 8 == 0, "tile_rows must be a positive multiple of 8"

    need = 2 * tb * row_bytes + 4 * _MIB
    vmem_limit = int(min(cap, max(need, budget_total) + 16 * _MIB))
    return tb, vmem_limit


def _make_kernel(n_valid_rows, upcast_to_f32):
    """Kernel closure over the static true batch size and the compute-dtype policy."""

    def kernel(x_ref, side_ref, out_ref):
        x = x_ref[...]                                    # [TB, C] native dtype
        if upcast_to_f32:
            x = x.astype(jnp.float32)

        side = side_ref[...]                              # [TB, 3] f32
        tgt = side[:, 0:1].astype(jnp.int32)              # exact small-int value cast
        bm = side[:, 1:2]                                 # s * m_list[target]
        w = side[:, 2:3]                                  # per_cls_weights[target]

        cls_ids = lax.broadcasted_iota(jnp.int32, x.shape, 1)
        is_tgt = cls_ids == tgt                           # [TB, C]
        # NOTE: targets are assumed in [0, C); out-of-range targets give x_t = 0
        # silently (PyTorch would raise).

        # Target logit: one non-zero term per row -> exact with f32 accumulate.
        x_t = jnp.sum(jnp.where(is_tgt, x, 0.0), axis=1, keepdims=True,
                      dtype=jnp.float32)                  # [TB, 1]

        # Row max of the RAW logits.  s*m >= 0 => final <= x elementwise, so
        # max(x) is a valid softmax shift for the margin-adjusted row.
        mx = jnp.max(x, axis=1, keepdims=True)            # [TB, 1] native dtype
        e = jnp.exp(x - mx)                               # full-tile EUP work, native dtype
        # Non-target exp sum (masked-sum form: avoids subtractive cancellation).
        s_nt = jnp.sum(jnp.where(is_tgt, 0.0, e), axis=1, keepdims=True,
                       dtype=jnp.float32)                 # [TB, 1] f32
        mx32 = mx.astype(jnp.float32)

        # log p[target] = (x_t - s*m - mx) - log(s_nt + exp(x_t - s*m - mx))
        t_shift = x_t - bm - mx32
        nll = jnp.log(s_nt + jnp.exp(t_shift)) - t_shift  # [TB, 1] f32

        # Mask rows past the true batch (the tail tile's OOB reads are garbage);
        # write exactly 0 so the wrapper's sums are unaffected.
        tb = out_ref.shape[0]
        row = lax.broadcasted_iota(jnp.int32, (tb, 1), 0) + pl.program_id(0) * tb
        out_ref[...] = jnp.where(row < n_valid_rows, w * nll, 0.0)

    return kernel


def ldam_loss_pallas(logits, target, m_list, s, per_cls_weights=None, tile_rows=None):
    """LDAM loss forward.  logits: [B, C] (f32 or bf16), target: [B] int."""
    B, C = logits.shape
    if m_list is None:
        # Spec's m_list=None branch degenerates to plain cross entropy.
        m_list = jnp.zeros((C,), dtype=jnp.float32)
    if per_cls_weights is None:
        per_cls_weights = jnp.ones((C,), dtype=jnp.float32)
    m_list = jnp.asarray(m_list, dtype=jnp.float32)
    per_cls_weights = jnp.asarray(per_cls_weights, dtype=jnp.float32)

    tgt = target.astype(jnp.int32)
    # Hoisted per-sample gathers ([B]-sized; avoids full [B, C] broadcast work in-kernel).
    bm = (m_list * jnp.float32(s))[tgt]                   # s * m_list[target]
    w = per_cls_weights[tgt]                              # per_cls_weights[target]
    # Coalesced lane-thin side input: one DMA / one padded VMEM block per tile.
    side = jnp.stack([tgt.astype(jnp.float32), bm, w], axis=1)   # [B, 3] f32

    itemsize = jnp.dtype(logits.dtype).itemsize
    TB, vmem_limit = _plan_tiles(B, C, itemsize, tile_rows)
    n_tiles = (B + TB - 1) // TB
    B_pad = n_tiles * TB   # only the tiny per-sample OUTPUT is padded; the [B, C]
                           # logits are streamed in place (no jnp.pad HBM copy).

    native_bf16 = (logits.dtype == jnp.bfloat16) and _native_bf16_compute_ok()
    kernel = _make_kernel(B, upcast_to_f32=not native_bf16)

    wnll = pl.pallas_call(
        kernel,
        out_shape=jax.ShapeDtypeStruct((B_pad, 1), jnp.float32),
        grid_spec=pltpu.PrefetchScalarGridSpec(
            num_scalar_prefetch=0,
            grid=(n_tiles,),
            in_specs=[
                pl.BlockSpec((TB, C), lambda i: (i, 0)),  # logits, native dtype
                pl.BlockSpec((TB, 3), lambda i: (i, 0)),  # [target, s*m, weight]
            ],
            out_specs=pl.BlockSpec((TB, 1), lambda i: (i, 0)),
        ),
        compiler_params=pltpu.CompilerParams(
            dimension_semantics=("parallel",),            # independent tiles -> v7x 2-TC
            vmem_limit_bytes=vmem_limit,
        ),
    )(logits, side)

    # torch cross_entropy 'mean' with weight=...: sum(w_i * nll_i) / sum(w_i).
    # Tail rows were written as exactly 0; the denominator uses the real [B] weights.
    return jnp.sum(wnll) / jnp.sum(w)


def make_m_list(cls_num_list, max_m=0.5):
    """Deterministic LDAM margin list from class counts (mirrors __init__)."""
    m = 1.0 / np.sqrt(np.sqrt(np.asarray(cls_num_list, dtype=np.float64)))
    m = m * (max_m / np.max(m))
    return jnp.asarray(m, dtype=jnp.float32)


def make_effective_number_weights(cls_num_list, beta=0.9999):
    """Class-balanced weights (mirrors the reweight_epoch branch of __init__)."""
    counts = np.asarray(cls_num_list, dtype=np.float64)
    effective_num = 1.0 - np.power(beta, counts)
    w = (1.0 - beta) / effective_num
    w = w / np.sum(w) * len(cls_num_list)
    return jnp.asarray(w, dtype=jnp.float32)


def ldam_loss_reference(logits, target, m_list, s, per_cls_weights=None):
    """Pure-JAX reference mirroring the PyTorch forward exactly."""
    B, C = logits.shape
    index = jax.nn.one_hot(target, C, dtype=jnp.float32)
    batch_m = (index * m_list[None, :]).sum(axis=1, keepdims=True)
    x_m = logits - batch_m * s
    final = jnp.where(index.astype(bool), x_m, logits)
    logp = jax.nn.log_softmax(final, axis=1)
    nll = -(logp * index).sum(axis=1)
    if per_cls_weights is None:
        per_cls_weights = jnp.ones((C,), jnp.float32)
    w_per = (index * per_cls_weights[None, :]).sum(axis=1)
    return (nll * w_per).sum() / w_per.sum()


if __name__ == "__main__":
    key = jax.random.PRNGKey(0)
    max_m, s = 0.5, 30.0

    C = 16
    cls_num_list = [int(1000 * (0.7 ** i)) + 1 for i in range(C)]
    m_list = make_m_list(cls_num_list, max_m=max_m)
    w_cls = make_effective_number_weights(cls_num_list)

    k1, k2, k3, k4, k5, k6 = jax.random.split(key, 6)

    # Case 1: f32, single exact tile, unweighted (reweight_epoch == -1 path).
    B = 8
    logits = jax.random.normal(k1, (B, C), dtype=jnp.float32) * 3.0
    target = jax.random.randint(k2, (B,), 0, C, dtype=jnp.int32)
    out = jax.block_until_ready(ldam_loss_pallas(logits, target, m_list, s))
    ref = ldam_loss_reference(logits, target, m_list, s)
    assert jnp.allclose(out, ref, rtol=1e-5, atol=1e-4), (out, ref)

    # Case 2: bf16 logits (native-dtype DMA, bf16 elementwise on v6e/v7x),
    # 3-tile grid with a masked 8-row tail (40 = 2*16 + 8), class weights.
    B2 = 40
    logits2 = (jax.random.normal(k3, (B2, C), dtype=jnp.float32) * 3.0).astype(jnp.bfloat16)
    target2 = jax.random.randint(k4, (B2,), 0, C, dtype=jnp.int32)
    out2 = jax.block_until_ready(
        ldam_loss_pallas(logits2, target2, m_list, s,
                         per_cls_weights=w_cls, tile_rows=16))
    ref2 = ldam_loss_reference(logits2.astype(jnp.float32), target2, m_list, s,
                               per_cls_weights=w_cls)
    assert jnp.allclose(out2, ref2, rtol=2e-2, atol=2e-2), (out2, ref2)

    # Case 3: f32, non-multiple-of-8 batch with automatic tile sizing
    # (masked tail rows, no logits padding), weighted.
    B3 = 37
    logits3 = jax.random.normal(k5, (B3, C), dtype=jnp.float32) * 3.0
    target3 = jax.random.randint(k6, (B3,), 0, C, dtype=jnp.int32)
    out3 = jax.block_until_ready(
        ldam_loss_pallas(logits3, target3, m_list, s, per_cls_weights=w_cls))
    ref3 = ldam_loss_reference(logits3, target3, m_list, s, per_cls_weights=w_cls)
    assert jnp.allclose(out3, ref3, rtol=1e-5, atol=1e-4), (out3, ref3)

    print("KERNEL_OK")
</pallas_src>

<mosaic_0001>
module attributes {stable_mosaic.version = 11 : i64} {
  func.func @kernel(%arg0: i32, %arg1: memref<8x16xf32, #tpu.memory_space<vmem>>, %arg2: memref<8x3xf32, #tpu.memory_space<vmem>>, %arg3: memref<8x1xf32, #tpu.memory_space<vmem>>) attributes {dimension_semantics = [#tpu.dimension_semantics<parallel>], iteration_bounds = array<i64: 1>, scalar_prefetch = 0 : i64, scratch_operands = 0 : i64, tpu.core_type = #tpu.core_type<tc>, window_params = [{transform_indices = @transform_0, window_bounds = array<i64: 8, 16>}, {transform_indices = @transform_1, window_bounds = array<i64: 8, 3>}, {transform_indices = @transform_2, window_bounds = array<i64: 8, 1>}]} {
    %c0 = arith.constant 0 : index
    %c0_0 = arith.constant 0 : index
    %0 = vector.load %arg1[%c0, %c0_0] : memref<8x16xf32, #tpu.memory_space<vmem>>, vector<8x16xf32>
    %c0_1 = arith.constant 0 : index
    %c0_2 = arith.constant 0 : index
    %1 = vector.load %arg2[%c0_1, %c0_2] : memref<8x3xf32, #tpu.memory_space<vmem>>, vector<8x3xf32>
    %2 = vector.extract_strided_slice %1 {offsets = [0, 0], sizes = [8, 1], strides = [1, 1]} : vector<8x3xf32> to vector<8x1xf32>
    %3 = arith.fptosi %2 : vector<8x1xf32> to vector<8x1xi32>
    %4 = vector.extract_strided_slice %1 {offsets = [0, 1], sizes = [8, 1], strides = [1, 1]} : vector<8x3xf32> to vector<8x1xf32>
    %5 = vector.extract_strided_slice %1 {offsets = [0, 2], sizes = [8, 1], strides = [1, 1]} : vector<8x3xf32> to vector<8x1xf32>
    %6 = tpu.iota {dimensions = array<i32: 1>} : vector<8x16xi32>
    %7 = vector.broadcast %3 : vector<8x1xi32> to vector<8x16xi32>
    %8 = arith.cmpi eq, %6, %7 : vector<8x16xi32>
    %cst = arith.constant 0.000000e+00 : f32
    %9 = vector.broadcast %cst : f32 to vector<8x16xf32>
    %10 = arith.select %8, %0, %9 : vector<8x16xi1>, vector<8x16xf32>
    %cst_3 = arith.constant dense<0.000000e+00> : vector<8xf32>
    %11 = vector.multi_reduction <add>, %10, %cst_3 [1] : vector<8x16xf32> to vector<8xf32>
    %12 = vector.shape_cast %11 : vector<8xf32> to vector<8x1xf32>
    %cst_4 = arith.constant dense<0xFF800000> : vector<8xf32>
    %13 = vector.multi_reduction <maximumf>, %0, %cst_4 [1] : vector<8x16xf32> to vector<8xf32>
    %14 = vector.shape_cast %13 : vector<8xf32> to vector<8x1xf32>
    %15 = vector.broadcast %14 : vector<8x1xf32> to vector<8x16xf32>
    %16 = arith.subf %0, %15 : vector<8x16xf32>
    %17 = math.exp %16 : vector<8x16xf32>
    %cst_5 = arith.constant 0.000000e+00 : f32
    %18 = vector.broadcast %cst_5 : f32 to vector<8x16xf32>
    %19 = arith.select %8, %18, %17 : vector<8x16xi1>, vector<8x16xf32>
    %cst_6 = arith.constant dense<0.000000e+00> : vector<8xf32>
    %20 = vector.multi_reduction <add>, %19, %cst_6 [1] : vector<8x16xf32> to vector<8xf32>
    %21 = vector.shape_cast %20 : vector<8xf32> to vector<8x1xf32>
    %22 = arith.subf %12, %4 : vector<8x1xf32>
    %23 = arith.subf %22, %14 : vector<8x1xf32>
    %24 = math.exp %23 : vector<8x1xf32>
    %25 = arith.addf %21, %24 : vector<8x1xf32>
    %26 = math.log %25 : vector<8x1xf32>
    %27 = arith.subf %26, %23 : vector<8x1xf32>
    %28 = tpu.iota {dimensions = array<i32: 0>} : vector<8x1xi32>
    %c8_i32 = arith.constant 8 : i32
    %29 = arith.muli %arg0, %c8_i32 : i32
    %30 = vector.broadcast %29 : i32 to vector<8x1xi32>
    %31 = arith.addi %28, %30 : vector<8x1xi32>
    %c8_i32_7 = arith.constant 8 : i32
    %32 = vector.broadcast %c8_i32_7 : i32 to vector<8x1xi32>
    %33 = arith.cmpi slt, %31, %32 : vector<8x1xi32>
    %34 = arith.mulf %5, %27 : vector<8x1xf32>
    %cst_8 = arith.constant 0.000000e+00 : f32
    %35 = vector.broadcast %cst_8 : f32 to vector<8x1xf32>
    %36 = arith.select %33, %34, %35 : vector<8x1xi1>, vector<8x1xf32>
    %c0_9 = arith.constant 0 : index
    %c0_10 = arith.constant 0 : index
    %37 = vector.load %arg3[%c0_9, %c0_10] : memref<8x1xf32, #tpu.memory_space<vmem>>, vector<8x1xf32>
    tpu.vector_store %arg3[%c0_9, %c0_10], %36 {strides = array<i32>} : memref<8x1xf32, #tpu.memory_space<vmem>>, vector<8x1xf32>,
    return
  }
  func.func @transform_0(%arg0: i32) -> (i32, i32) {
    %c0_i32 = arith.constant 0 : i32
    %c0_i32_0 = arith.constant 0 : i32
    return %arg0, %c0_i32 : i32, i32
  }
  func.func @transform_1(%arg0: i32) -> (i32, i32) {
    %c0_i32 = arith.constant 0 : i32
    %c0_i32_0 = arith.constant 0 : i32
    return %arg0, %c0_i32 : i32, i32
  }
  func.func @transform_2(%arg0: i32) -> (i32, i32) {
    %c0_i32 = arith.constant 0 : i32
    %c0_i32_0 = arith.constant 0 : i32
    return %arg0, %c0_i32 : i32, i32
  }
}

</mosaic_0001>

<llo_original>
// kernel: tpu_custom_call.1
$region0: #{tpu_custom_call.1}
  #allocation0 [shape = 'u32[]', space=smem, size = 0x4, offset = 0x4, fixed_abs, tag = 'smem constant byte address 0x4 - core index']
  #allocation1 [shape = 'u32[144,128]{1,0:T(1,128)}', space=vmem, size = 0x12000, scoped, tag = 'internal scratch']
  %s0 = inlined_call_operand.vmem [shape: f32[8,16], index: 0, kind: input, shape index: {}]
  %s1 = inlined_call_operand.vmem [shape: f32[8,3], index: 1, kind: input, shape index: {}]
  %s2 = inlined_call_operand.vmem [shape: f32[8,1], index: 2, kind: output, shape index: {}]
  %s3 = sld [smem:[#allocation0]]
  $region18: #{tpu_custom_call.1} parent=0
    _
  %s5 = ssub.s32 1, %s3
  %s6 = scalar_select 0, %s5, %s3
  // Predicated region
  $region2: #{tpu_custom_call.1} parent=0 // pred_check
    _
  $region3: #{tpu_custom_call.1} parent=0 // pred_check_branch
    %8 = sbr.rel (0) target = $region5
  $region4: #{tpu_custom_call.1} parent=0 // pred_region
    _
  $region5: #{tpu_custom_call.1} parent=0 // pred_fallthru
    _
  // Predicated region
  $region6: #{tpu_custom_call.1} parent=0 // pred_check
    _
  $region7: #{tpu_custom_call.1} parent=0 // pred_check_branch
    %10 = sbr.rel (0) target = $region9
  $region8: #{tpu_custom_call.1} parent=0 // pred_region
    _
  $region9: #{tpu_custom_call.1} parent=0 // pred_fallthru
    _
  %v11 = vld [vmem:[%s0] sm:$0xff]
  %v12 = vld [vmem:[%s1] sm:$0xff]
  %v13 = vcvt.f32.s32.to.zero.pseudo %v12
  %v14 = vlaneseq
  %v15 = vand.u32 %v14, 127
  %16 = vset.pattern.permute.xlu0 0
  %17 = vperm.xlu0 %16, %v13
  %v18 = vpop.permute.xlu0 %17
  %vm19 = vcmp.eq.s32.totalorder %v15, %v18
  %v20 = vsel %vm19, %v11, 0.0
  %vm21 = vcmask 130048
  %v22 = vsel %vm21, %v20, 0.0
  %23 = vadd.xlane.f32.xlu0 %v22
  %v24 = vpop.xlane.xlu0 %23
  %v25 = vsel %vm21, %v11, -inf
  %26 = vmax.xlane.f32.xlu0 %v25
  %v27 = vpop.xlane.xlu0 %26
  %v28 = vsub.f32 %v11, %v27
  %v29 = vmul.f32 %v28, 1.442695
  %v30 = vpow.pop %v29
  %v31 = vsel %vm19, 0.0, %v30
  %v32 = vsel %vm21, %v31, 0.0
  %33 = vadd.xlane.f32.xlu0 %v32
  %v34 = vpop.xlane.xlu0 %33
  %v35 = vsub.f32 %v24, %v12
  %v36 = vsub.f32 %v35, %v27
  %v37 = vmul.f32 %v36, 1.442695
  %v38 = vpow.pop %v37
  %v39 = vadd.f32 %v34, %v38
  %v40 = vlog2.pop %v39
  %v41 = vmul.f32 %v40, 0.6931472
  %v42 = vsub.f32 %v41, %v36
  %v43 = vlaneseq
  %v44 = vshrl.u32 %v43, 7
  %s45 = smul.u32 0, 8
  %v46 = vstv %s45
  %v47 = vadd.s32 %v44, %v46
  %vm48 = vcmp.lt.s32.totalorder %v47, 8
  %50 = vrot.lane.b32.xlu0 %v42, 1
  %v51 = vpop.permute.xlu0 %50
  %v53 = vmul.f32 %v12, %v51
  %v54 = vsel %vm48, %v53, 0.0
  %56 = vrot.lane.b32.xlu0 %v54, 126
  %v57 = vpop.permute.xlu0 %56
  %vm59 = vcmask 7168
  %60 = vst.msk [vmem:[%s2] sm:$0xff] %vm59, %v57
  // Predicated region
  $region10: #{tpu_custom_call.1} parent=0 // pred_check
    _
  $region11: #{tpu_custom_call.1} parent=0 // pred_check_branch
    %62 = sbr.rel (0) target = $region13
  $region12: #{tpu_custom_call.1} parent=0 // pred_region
    _
  $region13: #{tpu_custom_call.1} parent=0 // pred_fallthru
    _
  // Predicated region
  $region14: #{tpu_custom_call.1} parent=0 // pred_check
    _
  $region15: #{tpu_custom_call.1} parent=0 // pred_check_branch
    %64 = sbr.rel (0) target = $region17
  $region16: #{tpu_custom_call.1} parent=0 // pred_region
    _
  $region17: #{tpu_custom_call.1} parent=0 // pred_fallthru
    _

</llo_original>
